<compile_context>
chip_gen: v5e
topology: v5e:2x2
jax: 0.10.0
libtpu: 0.0.40
codegen_flags: <defaults>
</compile_context>

<pallas_src>
import jax
import jax.numpy as jnp
from jax.experimental import pallas as pl
from jax.experimental.pallas import tpu as pltpu


# ---------------------------------------------------------------------------
# Hardware sizing helpers
# ---------------------------------------------------------------------------
def _tpu_vmem_and_multicore():
    """Return (vmem_capacity_bytes, has_multiple_tensorcores) with fallbacks."""
    vmem = 64 << 20            # conservative default = v7x per-core VMEM
    multi_tc = False
    try:
        info = pltpu.get_tpu_info()
        vmem = int(getattr(info, "vmem_capacity_bytes", vmem))
    except Exception:
        pass
    try:
        kind = jax.devices()[0].device_kind.lower()
        multi_tc = "v7" in kind            # v7x: 2 TensorCores per chip
    except Exception:
        pass
    return vmem, multi_tc


def _pick_block_b(batch, seq, target_rows, want_multi_step, need_fn, cap):
    """Largest batch divisor whose block fits the row target and VMEM cap.

    Sublane rule: rows = d*seq must be a multiple of 8 unless the block spans
    the full B*S extent (d == batch).  If want_multi_step (multi-TensorCore
    chip), prefer >= 2 grid steps when it does not drop rows below 128.
    """
    def valid(d):
        return batch % d == 0 and ((d * seq) % 8 == 0 or d == batch)

    divisors = sorted(d for d in range(1, batch + 1) if valid(d))
    fit = [d for d in divisors
           if d * seq <= max(target_rows, seq) and need_fn(d) <= cap]
    if not fit:
        return divisors[0]
    bb = max(fit)
    if want_multi_step and batch // bb < 2:
        alt = [d for d in fit if batch // d >= 2 and d * seq >= 128]
        if alt:
            bb = max(alt)
    return bb


# ---------------------------------------------------------------------------
# Kernel
# ---------------------------------------------------------------------------
def _make_mha_kernel(num_heads, att_size, block_b, seq, hidden, has_bias,
                     fused_qkv, compute_dtype, approx_recip):
    nh, dk, S, H = num_heads, att_size, seq, hidden
    rows = block_b * S

    def kernel(*refs):
        pos = [0]

        def nxt():
            r = refs[pos[0]]
            pos[0] += 1
            return r

        if fused_qkv:
            x_ref = nxt()
        else:
            q_ref, k_ref, v_ref = nxt(), nxt(), nxt()
        bias_ref = nxt() if has_bias else None
        if fused_qkv:
            wqkv_ref, bqkv_ref = nxt(), nxt()
        else:
            wq_ref, bq_ref = nxt(), nxt()
            wk_ref, bk_ref = nxt(), nxt()
            wv_ref, bv_ref = nxt(), nxt()
        wo_ref, bo_ref = nxt(), nxt()
        o_ref = nxt()
        ctx_ref = nxt()

        # ---- Q/K/V projections over all rows of this block -----------------
        # f32 MXU accumulation; the 1/sqrt(dk) scale is folded into Wq/bq.
        if fused_qkv:
            x = x_ref[...].astype(compute_dtype)
            qkv = jnp.dot(x, wqkv_ref[...],
                          preferred_element_type=jnp.float32) + bqkv_ref[...]
            Q = qkv[:, 0 * H:1 * H]
            K = qkv[:, 1 * H:2 * H]
            V = qkv[:, 2 * H:3 * H]
        else:
            Q = jnp.dot(q_ref[...].astype(compute_dtype), wq_ref[...],
                        preferred_element_type=jnp.float32) + bq_ref[...]
            K = jnp.dot(k_ref[...].astype(compute_dtype), wk_ref[...],
                        preferred_element_type=jnp.float32) + bk_ref[...]
            V = jnp.dot(v_ref[...].astype(compute_dtype), wv_ref[...],
                        preferred_element_type=jnp.float32) + bv_ref[...]

        # Single cast to compute_dtype + leading-dim regroup (lane dim kept).
        Q3 = Q.astype(compute_dtype).reshape(block_b, S, H)
        K3 = K.astype(compute_dtype).reshape(block_b, S, H)
        V3 = V.astype(compute_dtype).reshape(block_b, S, H)

        bias4 = bias_ref[...] if has_bias else None  # (block_b, nh, S, S)

        # ---- per-head attention, batched over the block's batch elements ---
        for h in range(nh):                 # static unroll; nh is small
            sl = slice(h * dk, (h + 1) * dk)
            qh = Q3[:, :, sl]
            kh = K3[:, :, sl]
            vh = V3[:, :, sl]

            # scores via dot_general contracting dk (no materialized kh.T)
            s = jnp.einsum('bqd,bkd->bqk', qh, kh,
                           preferred_element_type=jnp.float32)  # (b, S, S)
            if has_bias:
                s = s + bias4[:, h].astype(jnp.float32)

            # softmax over keys in f32; normalization deferred past the PV
            # matmul (softmax is linear in p) so the scale touches (S, dk)
            # elements instead of (S, S).
            s = s - jnp.max(s, axis=-1, keepdims=True)
            p = jnp.exp(s)
            denom = jnp.sum(p, axis=-1, keepdims=True)
            # TODO(synk): attention dropout omitted (inference / p=0).
            ctx_h = jnp.einsum('bqk,bkd->bqd', p.astype(compute_dtype), vh,
                               preferred_element_type=jnp.float32)
            ctx_h = ctx_h * pl.reciprocal(denom, approx=approx_recip)

            # write this head's context straight into its lane slice
            ctx_ref[:, :, sl] = ctx_h.astype(compute_dtype)

        # ---- output projection over all rows of the block ------------------
        ctx = ctx_ref[...].reshape(rows, H)
        out = jnp.dot(ctx, wo_ref[...],
                      preferred_element_type=jnp.float32) + bo_ref[...]
        o_ref[...] = out.astype(o_ref.dtype)

    return kernel


# ---------------------------------------------------------------------------
# Wrapper
# ---------------------------------------------------------------------------
def multi_head_attention(q, k, v, params, num_heads, attn_bias=None, *,
                         compute_dtype=jnp.bfloat16, target_rows=None,
                         approx_recip=None, fuse_qkv=None):
    """q, k, v: [B, S, H] float32.  attn_bias: optional [B, nh, S, S]."""
    B, S, H = q.shape
    if H % num_heads != 0:
        raise ValueError(f"hidden_size {H} not divisible by num_heads {num_heads}")
    dk = H // num_heads
    scale = dk ** (-0.5)
    if approx_recip is None:
        # Exact reciprocal on the f32 (module-faithful) path; EUP approx on bf16.
        approx_recip = compute_dtype != jnp.float32
    if fuse_qkv is None:
        fuse_qkv = (q is k) and (q is v)     # self-attention: one input stream

    wq, bq, wk, bk, wv, bv, wo, bo = params
    # PyTorch nn.Linear stores W as (out, in); pre-transpose to (in, out) so
    # the kernel does plain x @ W.  Fold the query scale into the Q projection.
    wo_t = wo.T.astype(compute_dtype)
    bo2 = bo.reshape(1, H).astype(jnp.float32)
    if fuse_qkv:
        wqkv = jnp.concatenate([wq.T * scale, wk.T, wv.T], axis=1)   # (H, 3H)
        bqkv = jnp.concatenate([bq * scale, bk, bv]).reshape(1, 3 * H)
        weights = [wqkv.astype(compute_dtype), bqkv.astype(jnp.float32),
                   wo_t, bo2]
    else:
        weights = [(wq.T * scale).astype(compute_dtype),
                   (bq * scale).reshape(1, H).astype(jnp.float32),
                   wk.T.astype(compute_dtype), bk.reshape(1, H).astype(jnp.float32),
                   wv.T.astype(compute_dtype), bv.reshape(1, H).astype(jnp.float32),
                   wo_t, bo2]

    has_bias = attn_bias is not None
    if has_bias and attn_bias.shape != (B, num_heads, S, S):
        raise ValueError(f"attn_bias shape {attn_bias.shape} != "
                         f"{(B, num_heads, S, S)}")

    # ---- generation-aware block / VMEM sizing -------------------------------
    vmem_cap, multi_tc = _tpu_vmem_and_multicore()
    if target_rows is None:
        # v5e/v6e (128 MiB VMEM): big blocks; v7x (64 MiB): stay conservative.
        target_rows = 2048 if vmem_cap >= (96 << 20) else 512
    cap = max(min(vmem_cap * 3 // 4, vmem_cap - (8 << 20)), 16 << 20)

    ic = jnp.dtype(compute_dtype).itemsize
    in_item = jnp.dtype(q.dtype).itemsize
    w_bytes = sum(int(w.size) * w.dtype.itemsize for w in weights)

    def need_fn(d):
        """Per-step VMEM estimate for block_b = d (incl. f32 intermediates)."""
        r = d * S
        stream = (1 if fuse_qkv else 3) * r * H * in_item   # input blocks
        stream += r * H * in_item                           # output block
        if has_bias:
            stream += d * num_heads * S * S * ic            # bias block
        inter = 3 * r * H * 4          # f32 Q, K, V after projection
        inter += 3 * r * H * ic        # compute_dtype copies
        inter += 2 * d * S * S * 4     # f32 scores + exp for one head
        inter += r * H * 4             # f32 output-projection result
        scratch = r * H * ic           # ctx scratch
        return 2 * (stream + w_bytes) + inter + scratch + (2 << 20)

    block_b = _pick_block_b(B, S, target_rows, multi_tc, need_fn, cap)
    rows = block_b * S
    grid = (B // block_b,)

    need = need_fn(block_b)
    vmem_limit = None
    if need > (32 << 20):
        vmem_limit = int(min(max(need * 5 // 4, 32 << 20), cap))

    # ---- inputs / specs ------------------------------------------------------
    row_spec = pl.BlockSpec((rows, H), lambda i: (i, 0))

    def full_spec(a):
        nd = a.ndim
        return pl.BlockSpec(a.shape, lambda i: (0,) * nd)

    if fuse_qkv:
        inputs = [q.reshape(B * S, H)]
        in_specs = [row_spec]
    else:
        inputs = [q.reshape(B * S, H), k.reshape(B * S, H), v.reshape(B * S, H)]
        in_specs = [row_spec, row_spec, row_spec]
    if has_bias:
        # Bias streamed in compute_dtype (bf16 by default) to halve its HBM
        # traffic / VMEM footprint; added to the f32 scores inside the kernel.
        inputs.append(attn_bias.astype(compute_dtype))
        in_specs.append(pl.BlockSpec((block_b, num_heads, S, S),
                                     lambda i: (i, 0, 0, 0)))
    inputs += weights
    in_specs += [full_spec(w) for w in weights]

    kernel = _make_mha_kernel(num_heads, dk, block_b, S, H, has_bias,
                              fuse_qkv, compute_dtype, approx_recip)

    out2 = pl.pallas_call(
        kernel,
        out_shape=jax.ShapeDtypeStruct((B * S, H), q.dtype),
        grid_spec=pltpu.PrefetchScalarGridSpec(
            num_scalar_prefetch=0,
            grid=grid,
            in_specs=in_specs,
            out_specs=row_spec,
            scratch_shapes=[pltpu.VMEM((block_b, S, H), compute_dtype)],
        ),
        compiler_params=pltpu.CompilerParams(
            dimension_semantics=("parallel",),
            vmem_limit_bytes=vmem_limit),
    )(*inputs)

    return out2.reshape(B, S, H)


# ---------------------------------------------------------------------------
# Reference + test
# ---------------------------------------------------------------------------
def _reference_mha(q, k, v, params, num_heads, attn_bias=None):
    """Pure-JAX reference mirroring the PyTorch forward."""
    wq, bq, wk, bk, wv, bv, wo, bo = params
    B, S, H = q.shape
    dk = H // num_heads
    scale = dk ** (-0.5)

    Q = (q @ wq.T + bq).reshape(B, S, num_heads, dk).transpose(0, 2, 1, 3)
    K = (k @ wk.T + bk).reshape(B, S, num_heads, dk).transpose(0, 2, 3, 1)
    V = (v @ wv.T + bv).reshape(B, S, num_heads, dk).transpose(0, 2, 1, 3)

    x = (Q * scale) @ K
    if attn_bias is not None:
        x = x + attn_bias
    x = jax.nn.softmax(x, axis=3)
    x = x @ V
    x = x.transpose(0, 2, 1, 3).reshape(B, S, num_heads * dk)
    return x @ wo.T + bo


if __name__ == "__main__":
    B, S, H = 2, 8, 32
    num_heads = 4

    key = jax.random.PRNGKey(0)
    ks = jax.random.split(key, 13)

    q = jax.random.normal(ks[0], (B, S, H), dtype=jnp.float32)
    k = jax.random.normal(ks[1], (B, S, H), dtype=jnp.float32)
    v = jax.random.normal(ks[2], (B, S, H), dtype=jnp.float32)
    x_self = jax.random.normal(ks[12], (B, S, H), dtype=jnp.float32)

    # Deterministic synthetic parameters (PyTorch Linear: (out, in) + (out,))
    def lin_init(kw, kb, out_f, in_f):
        bound = 1.0 / (in_f ** 0.5)
        w = jax.random.uniform(kw, (out_f, in_f), jnp.float32, -bound, bound)
        b = jax.random.uniform(kb, (out_f,), jnp.float32, -bound, bound)
        return w, b

    wq, bq = lin_init(ks[3], ks[4], H, H)
    wk, bk = lin_init(ks[5], ks[6], H, H)
    wv, bv = lin_init(ks[7], ks[8], H, H)
    wo, bo = lin_init(ks[9], ks[10], H, H)
    params = (wq, bq, wk, bk, wv, bv, wo, bo)

    attn_bias = 0.1 * jax.random.normal(ks[11], (B, num_heads, S, S),
                                        dtype=jnp.float32)

    # 1) exact f32 path, distinct q/k/v, no bias (general kernel)
    out_f32 = jax.block_until_ready(
        multi_head_attention(q, k, v, params, num_heads,
                             compute_dtype=jnp.float32))
    ref = _reference_mha(q, k, v, params, num_heads)
    assert out_f32.shape == (B, S, H)
    assert jnp.allclose(out_f32, ref, atol=1e-4, rtol=1e-5), (
        f"f32 max err {jnp.max(jnp.abs(out_f32 - ref))}")

    # 2) exact f32 path, distinct q/k/v, with attention bias
    out_bias = jax.block_until_ready(
        multi_head_attention(q, k, v, params, num_heads, attn_bias=attn_bias,
                             compute_dtype=jnp.float32))
    ref_bias = _reference_mha(q, k, v, params, num_heads, attn_bias=attn_bias)
    assert jnp.allclose(out_bias, ref_bias, atol=1e-4, rtol=1e-5), (
        f"bias max err {jnp.max(jnp.abs(out_bias - ref_bias))}")

    # 3) exact f32 self-attention (q=k=v) with bias -> fused QKV kernel
    out_self = jax.block_until_ready(
        multi_head_attention(x_self, x_self, x_self, params, num_heads,
                             attn_bias=attn_bias, compute_dtype=jnp.float32))
    ref_self = _reference_mha(x_self, x_self, x_self, params, num_heads,
                              attn_bias=attn_bias)
    assert jnp.allclose(out_self, ref_self, atol=1e-4, rtol=1e-5), (
        f"fused-qkv max err {jnp.max(jnp.abs(out_self - ref_self))}")

    # 4) default fast path: bf16 MXU operands / bf16 bias + ctx, f32 softmax
    out_bf16 = jax.block_until_ready(
        multi_head_attention(x_self, x_self, x_self, params, num_heads,
                             attn_bias=attn_bias))
    assert out_bf16.shape == (B, S, H)
    assert jnp.allclose(out_bf16, ref_self, atol=1e-1, rtol=5e-2), (
        f"bf16 max err {jnp.max(jnp.abs(out_bf16 - ref_self))}")

    print("KERNEL_OK")
</pallas_src>

<mosaic_0001>
module attributes {stable_mosaic.version = 11 : i64} {
  func.func @kernel(%arg0: i32, %arg1: memref<16x32xf32, #tpu.memory_space<vmem>>, %arg2: memref<16x32xf32, #tpu.memory_space<vmem>>, %arg3: memref<16x32xf32, #tpu.memory_space<vmem>>, %arg4: memref<32x32xf32, #tpu.memory_space<vmem>>, %arg5: memref<1x32xf32, #tpu.memory_space<vmem>>, %arg6: memref<32x32xf32, #tpu.memory_space<vmem>>, %arg7: memref<1x32xf32, #tpu.memory_space<vmem>>, %arg8: memref<32x32xf32, #tpu.memory_space<vmem>>, %arg9: memref<1x32xf32, #tpu.memory_space<vmem>>, %arg10: memref<32x32xf32, #tpu.memory_space<vmem>>, %arg11: memref<1x32xf32, #tpu.memory_space<vmem>>, %arg12: memref<16x32xf32, #tpu.memory_space<vmem>>, %arg13: memref<2x8x32xf32, #tpu.memory_space<vmem>>) attributes {dimension_semantics = [#tpu.dimension_semantics<parallel>], iteration_bounds = array<i64: 1>, scalar_prefetch = 0 : i64, scratch_operands = 1 : i64, tpu.core_type = #tpu.core_type<tc>, window_params = [{transform_indices = @transform_0, window_bounds = array<i64: 16, 32>}, {transform_indices = @transform_1, window_bounds = array<i64: 16, 32>}, {transform_indices = @transform_2, window_bounds = array<i64: 16, 32>}, {pipeline_mode = #tpu.pipeline_mode<synchronous>, transform_indices = @transform_3, window_bounds = array<i64: 32, 32>}, {pipeline_mode = #tpu.pipeline_mode<synchronous>, transform_indices = @transform_4, window_bounds = array<i64: 1, 32>}, {pipeline_mode = #tpu.pipeline_mode<synchronous>, transform_indices = @transform_5, window_bounds = array<i64: 32, 32>}, {pipeline_mode = #tpu.pipeline_mode<synchronous>, transform_indices = @transform_6, window_bounds = array<i64: 1, 32>}, {pipeline_mode = #tpu.pipeline_mode<synchronous>, transform_indices = @transform_7, window_bounds = array<i64: 32, 32>}, {pipeline_mode = #tpu.pipeline_mode<synchronous>, transform_indices = @transform_8, window_bounds = array<i64: 1, 32>}, {pipeline_mode = #tpu.pipeline_mode<synchronous>, transform_indices = @transform_9, window_bounds = array<i64: 32, 32>}, {pipeline_mode = #tpu.pipeline_mode<synchronous>, transform_indices = @transform_10, window_bounds = array<i64: 1, 32>}, {transform_indices = @transform_11, window_bounds = array<i64: 16, 32>}]} {
    %c0 = arith.constant 0 : index
    %c0_0 = arith.constant 0 : index
    %0 = vector.load %arg1[%c0, %c0_0] : memref<16x32xf32, #tpu.memory_space<vmem>>, vector<16x32xf32>
    %c0_1 = arith.constant 0 : index
    %c0_2 = arith.constant 0 : index
    %1 = vector.load %arg4[%c0_1, %c0_2] : memref<32x32xf32, #tpu.memory_space<vmem>>, vector<32x32xf32>
    %cst = arith.constant dense<0.000000e+00> : vector<16x32xf32>
    %2 = tpu.matmul %0, %1, %cst {dimension_numbers = #tpu.dot_dimension_numbers<[1], [0], [0], [1], [0, 0, 1, 1], [], []>} : vector<16x32xf32>, vector<32x32xf32>, vector<16x32xf32> -> vector<16x32xf32>
    %c0_3 = arith.constant 0 : index
    %c0_4 = arith.constant 0 : index
    %3 = vector.load %arg5[%c0_3, %c0_4] : memref<1x32xf32, #tpu.memory_space<vmem>>, vector<1x32xf32>
    %4 = vector.broadcast %3 : vector<1x32xf32> to vector<16x32xf32>
    %5 = arith.addf %2, %4 : vector<16x32xf32>
    %c0_5 = arith.constant 0 : index
    %c0_6 = arith.constant 0 : index
    %6 = vector.load %arg2[%c0_5, %c0_6] : memref<16x32xf32, #tpu.memory_space<vmem>>, vector<16x32xf32>
    %c0_7 = arith.constant 0 : index
    %c0_8 = arith.constant 0 : index
    %7 = vector.load %arg6[%c0_7, %c0_8] : memref<32x32xf32, #tpu.memory_space<vmem>>, vector<32x32xf32>
    %cst_9 = arith.constant dense<0.000000e+00> : vector<16x32xf32>
    %8 = tpu.matmul %6, %7, %cst_9 {dimension_numbers = #tpu.dot_dimension_numbers<[1], [0], [0], [1], [0, 0, 1, 1], [], []>} : vector<16x32xf32>, vector<32x32xf32>, vector<16x32xf32> -> vector<16x32xf32>
    %c0_10 = arith.constant 0 : index
    %c0_11 = arith.constant 0 : index
    %9 = vector.load %arg7[%c0_10, %c0_11] : memref<1x32xf32, #tpu.memory_space<vmem>>, vector<1x32xf32>
    %10 = vector.broadcast %9 : vector<1x32xf32> to vector<16x32xf32>
    %11 = arith.addf %8, %10 : vector<16x32xf32>
    %c0_12 = arith.constant 0 : index
    %c0_13 = arith.constant 0 : index
    %12 = vector.load %arg3[%c0_12, %c0_13] : memref<16x32xf32, #tpu.memory_space<vmem>>, vector<16x32xf32>
    %c0_14 = arith.constant 0 : index
    %c0_15 = arith.constant 0 : index
    %13 = vector.load %arg8[%c0_14, %c0_15] : memref<32x32xf32, #tpu.memory_space<vmem>>, vector<32x32xf32>
    %cst_16 = arith.constant dense<0.000000e+00> : vector<16x32xf32>
    %14 = tpu.matmul %12, %13, %cst_16 {dimension_numbers = #tpu.dot_dimension_numbers<[1], [0], [0], [1], [0, 0, 1, 1], [], []>} : vector<16x32xf32>, vector<32x32xf32>, vector<16x32xf32> -> vector<16x32xf32>
    %c0_17 = arith.constant 0 : index
    %c0_18 = arith.constant 0 : index
    %15 = vector.load %arg9[%c0_17, %c0_18] : memref<1x32xf32, #tpu.memory_space<vmem>>, vector<1x32xf32>
    %16 = vector.broadcast %15 : vector<1x32xf32> to vector<16x32xf32>
    %17 = arith.addf %14, %16 : vector<16x32xf32>
    %18 = vector.shape_cast %5 : vector<16x32xf32> to vector<2x8x32xf32>
    %19 = vector.shape_cast %11 : vector<16x32xf32> to vector<2x8x32xf32>
    %20 = vector.shape_cast %17 : vector<16x32xf32> to vector<2x8x32xf32>
    %21 = vector.extract_strided_slice %18 {offsets = [0, 0, 0], sizes = [2, 8, 8], strides = [1, 1, 1]} : vector<2x8x32xf32> to vector<2x8x8xf32>
    %22 = vector.extract_strided_slice %19 {offsets = [0, 0, 0], sizes = [2, 8, 8], strides = [1, 1, 1]} : vector<2x8x32xf32> to vector<2x8x8xf32>
    %23 = vector.extract_strided_slice %20 {offsets = [0, 0, 0], sizes = [2, 8, 8], strides = [1, 1, 1]} : vector<2x8x32xf32> to vector<2x8x8xf32>
    "tpu.trace_start"() <{level = 10 : i32, message = "bqd,bkd->bqk"}> : () -> ()
    %cst_19 = arith.constant dense<0.000000e+00> : vector<2x8x8xf32>
    %24 = tpu.matmul %21, %22, %cst_19 {dimension_numbers = #tpu.dot_dimension_numbers<[2], [2], [1], [1], [0, 0, 0, 1, 1, 1], [0], [0]>} : vector<2x8x8xf32>, vector<2x8x8xf32>, vector<2x8x8xf32> -> vector<2x8x8xf32>
    "tpu.trace_stop"() : () -> ()
    %cst_20 = arith.constant dense<0xFF800000> : vector<2x8xf32>
    %25 = vector.multi_reduction <maximumf>, %24, %cst_20 [2] : vector<2x8x8xf32> to vector<2x8xf32>
    %26 = vector.shape_cast %25 : vector<2x8xf32> to vector<2x8x1xf32>
    %27 = vector.broadcast %26 : vector<2x8x1xf32> to vector<2x8x8xf32>
    %28 = arith.subf %24, %27 : vector<2x8x8xf32>
    %29 = math.exp %28 : vector<2x8x8xf32>
    %cst_21 = arith.constant dense<0.000000e+00> : vector<2x8xf32>
    %30 = vector.multi_reduction <add>, %29, %cst_21 [2] : vector<2x8x8xf32> to vector<2x8xf32>
    %31 = vector.shape_cast %30 : vector<2x8xf32> to vector<2x8x1xf32>
    "tpu.trace_start"() <{level = 10 : i32, message = "bqk,bkd->bqd"}> : () -> ()
    %cst_22 = arith.constant dense<0.000000e+00> : vector<2x8x8xf32>
    %32 = tpu.matmul %29, %23, %cst_22 {dimension_numbers = #tpu.dot_dimension_numbers<[2], [1], [1], [2], [0, 0, 0, 1, 1, 2], [0], [0]>} : vector<2x8x8xf32>, vector<2x8x8xf32>, vector<2x8x8xf32> -> vector<2x8x8xf32>
    "tpu.trace_stop"() : () -> ()
    %33 = tpu.reciprocal %31 : vector<2x8x1xf32> -> vector<2x8x1xf32>
    %34 = vector.broadcast %33 : vector<2x8x1xf32> to vector<2x8x8xf32>
    %35 = arith.mulf %32, %34 : vector<2x8x8xf32>
    %c0_23 = arith.constant 0 : index
    %c0_24 = arith.constant 0 : index
    %c0_25 = arith.constant 0 : index
    %36 = vector.load %arg13[%c0_23, %c0_24, %c0_25] : memref<2x8x32xf32, #tpu.memory_space<vmem>>, vector<2x8x8xf32>
    tpu.vector_store %arg13[%c0_23, %c0_24, %c0_25], %35 {strides = array<i32>} : memref<2x8x32xf32, #tpu.memory_space<vmem>>, vector<2x8x8xf32>,
    %37 = vector.extract_strided_slice %18 {offsets = [0, 0, 8], sizes = [2, 8, 8], strides = [1, 1, 1]} : vector<2x8x32xf32> to vector<2x8x8xf32>
    %38 = vector.extract_strided_slice %19 {offsets = [0, 0, 8], sizes = [2, 8, 8], strides = [1, 1, 1]} : vector<2x8x32xf32> to vector<2x8x8xf32>
    %39 = vector.extract_strided_slice %20 {offsets = [0, 0, 8], sizes = [2, 8, 8], strides = [1, 1, 1]} : vector<2x8x32xf32> to vector<2x8x8xf32>
    "tpu.trace_start"() <{level = 10 : i32, message = "bqd,bkd->bqk"}> : () -> ()
    %cst_26 = arith.constant dense<0.000000e+00> : vector<2x8x8xf32>
    %40 = tpu.matmul %37, %38, %cst_26 {dimension_numbers = #tpu.dot_dimension_numbers<[2], [2], [1], [1], [0, 0, 0, 1, 1, 1], [0], [0]>} : vector<2x8x8xf32>, vector<2x8x8xf32>, vector<2x8x8xf32> -> vector<2x8x8xf32>
    "tpu.trace_stop"() : () -> ()
    %cst_27 = arith.constant dense<0xFF800000> : vector<2x8xf32>
    %41 = vector.multi_reduction <maximumf>, %40, %cst_27 [2] : vector<2x8x8xf32> to vector<2x8xf32>
    %42 = vector.shape_cast %41 : vector<2x8xf32> to vector<2x8x1xf32>
    %43 = vector.broadcast %42 : vector<2x8x1xf32> to vector<2x8x8xf32>
    %44 = arith.subf %40, %43 : vector<2x8x8xf32>
    %45 = math.exp %44 : vector<2x8x8xf32>
    %cst_28 = arith.constant dense<0.000000e+00> : vector<2x8xf32>
    %46 = vector.multi_reduction <add>, %45, %cst_28 [2] : vector<2x8x8xf32> to vector<2x8xf32>
    %47 = vector.shape_cast %46 : vector<2x8xf32> to vector<2x8x1xf32>
    "tpu.trace_start"() <{level = 10 : i32, message = "bqk,bkd->bqd"}> : () -> ()
    %cst_29 = arith.constant dense<0.000000e+00> : vector<2x8x8xf32>
    %48 = tpu.matmul %45, %39, %cst_29 {dimension_numbers = #tpu.dot_dimension_numbers<[2], [1], [1], [2], [0, 0, 0, 1, 1, 2], [0], [0]>} : vector<2x8x8xf32>, vector<2x8x8xf32>, vector<2x8x8xf32> -> vector<2x8x8xf32>
    "tpu.trace_stop"() : () -> ()
    %49 = tpu.reciprocal %47 : vector<2x8x1xf32> -> vector<2x8x1xf32>
    %50 = vector.broadcast %49 : vector<2x8x1xf32> to vector<2x8x8xf32>
    %51 = arith.mulf %48, %50 : vector<2x8x8xf32>
    %c0_30 = arith.constant 0 : index
    %c0_31 = arith.constant 0 : index
    %c8 = arith.constant 8 : index
    %52 = vector.load %arg13[%c0_30, %c0_31, %c8] : memref<2x8x32xf32, #tpu.memory_space<vmem>>, vector<2x8x8xf32>
    tpu.vector_store %arg13[%c0_30, %c0_31, %c8], %51 {strides = array<i32>} : memref<2x8x32xf32, #tpu.memory_space<vmem>>, vector<2x8x8xf32>,
    %53 = vector.extract_strided_slice %18 {offsets = [0, 0, 16], sizes = [2, 8, 8], strides = [1, 1, 1]} : vector<2x8x32xf32> to vector<2x8x8xf32>
    %54 = vector.extract_strided_slice %19 {offsets = [0, 0, 16], sizes = [2, 8, 8], strides = [1, 1, 1]} : vector<2x8x32xf32> to vector<2x8x8xf32>
    %55 = vector.extract_strided_slice %20 {offsets = [0, 0, 16], sizes = [2, 8, 8], strides = [1, 1, 1]} : vector<2x8x32xf32> to vector<2x8x8xf32>
    "tpu.trace_start"() <{level = 10 : i32, message = "bqd,bkd->bqk"}> : () -> ()
    %cst_32 = arith.constant dense<0.000000e+00> : vector<2x8x8xf32>
    %56 = tpu.matmul %53, %54, %cst_32 {dimension_numbers = #tpu.dot_dimension_numbers<[2], [2], [1], [1], [0, 0, 0, 1, 1, 1], [0], [0]>} : vector<2x8x8xf32>, vector<2x8x8xf32>, vector<2x8x8xf32> -> vector<2x8x8xf32>
    "tpu.trace_stop"() : () -> ()
    %cst_33 = arith.constant dense<0xFF800000> : vector<2x8xf32>
    %57 = vector.multi_reduction <maximumf>, %56, %cst_33 [2] : vector<2x8x8xf32> to vector<2x8xf32>
    %58 = vector.shape_cast %57 : vector<2x8xf32> to vector<2x8x1xf32>
    %59 = vector.broadcast %58 : vector<2x8x1xf32> to vector<2x8x8xf32>
    %60 = arith.subf %56, %59 : vector<2x8x8xf32>
    %61 = math.exp %60 : vector<2x8x8xf32>
    %cst_34 = arith.constant dense<0.000000e+00> : vector<2x8xf32>
    %62 = vector.multi_reduction <add>, %61, %cst_34 [2] : vector<2x8x8xf32> to vector<2x8xf32>
    %63 = vector.shape_cast %62 : vector<2x8xf32> to vector<2x8x1xf32>
    "tpu.trace_start"() <{level = 10 : i32, message = "bqk,bkd->bqd"}> : () -> ()
    %cst_35 = arith.constant dense<0.000000e+00> : vector<2x8x8xf32>
    %64 = tpu.matmul %61, %55, %cst_35 {dimension_numbers = #tpu.dot_dimension_numbers<[2], [1], [1], [2], [0, 0, 0, 1, 1, 2], [0], [0]>} : vector<2x8x8xf32>, vector<2x8x8xf32>, vector<2x8x8xf32> -> vector<2x8x8xf32>
    "tpu.trace_stop"() : () -> ()
    %65 = tpu.reciprocal %63 : vector<2x8x1xf32> -> vector<2x8x1xf32>
    %66 = vector.broadcast %65 : vector<2x8x1xf32> to vector<2x8x8xf32>
    %67 = arith.mulf %64, %66 : vector<2x8x8xf32>
    %c0_36 = arith.constant 0 : index
    %c0_37 = arith.constant 0 : index
    %c16 = arith.constant 16 : index
    %68 = vector.load %arg13[%c0_36, %c0_37, %c16] : memref<2x8x32xf32, #tpu.memory_space<vmem>>, vector<2x8x8xf32>
    tpu.vector_store %arg13[%c0_36, %c0_37, %c16], %67 {strides = array<i32>} : memref<2x8x32xf32, #tpu.memory_space<vmem>>, vector<2x8x8xf32>,
    %69 = vector.extract_strided_slice %18 {offsets = [0, 0, 24], sizes = [2, 8, 8], strides = [1, 1, 1]} : vector<2x8x32xf32> to vector<2x8x8xf32>
    %70 = vector.extract_strided_slice %19 {offsets = [0, 0, 24], sizes = [2, 8, 8], strides = [1, 1, 1]} : vector<2x8x32xf32> to vector<2x8x8xf32>
    %71 = vector.extract_strided_slice %20 {offsets = [0, 0, 24], sizes = [2, 8, 8], strides = [1, 1, 1]} : vector<2x8x32xf32> to vector<2x8x8xf32>
    "tpu.trace_start"() <{level = 10 : i32, message = "bqd,bkd->bqk"}> : () -> ()
    %cst_38 = arith.constant dense<0.000000e+00> : vector<2x8x8xf32>
    %72 = tpu.matmul %69, %70, %cst_38 {dimension_numbers = #tpu.dot_dimension_numbers<[2], [2], [1], [1], [0, 0, 0, 1, 1, 1], [0], [0]>} : vector<2x8x8xf32>, vector<2x8x8xf32>, vector<2x8x8xf32> -> vector<2x8x8xf32>
    "tpu.trace_stop"() : () -> ()
    %cst_39 = arith.constant dense<0xFF800000> : vector<2x8xf32>
    %73 = vector.multi_reduction <maximumf>, %72, %cst_39 [2] : vector<2x8x8xf32> to vector<2x8xf32>
    %74 = vector.shape_cast %73 : vector<2x8xf32> to vector<2x8x1xf32>
    %75 = vector.broadcast %74 : vector<2x8x1xf32> to vector<2x8x8xf32>
    %76 = arith.subf %72, %75 : vector<2x8x8xf32>
    %77 = math.exp %76 : vector<2x8x8xf32>
    %cst_40 = arith.constant dense<0.000000e+00> : vector<2x8xf32>
    %78 = vector.multi_reduction <add>, %77, %cst_40 [2] : vector<2x8x8xf32> to vector<2x8xf32>
    %79 = vector.shape_cast %78 : vector<2x8xf32> to vector<2x8x1xf32>
    "tpu.trace_start"() <{level = 10 : i32, message = "bqk,bkd->bqd"}> : () -> ()
    %cst_41 = arith.constant dense<0.000000e+00> : vector<2x8x8xf32>
    %80 = tpu.matmul %77, %71, %cst_41 {dimension_numbers = #tpu.dot_dimension_numbers<[2], [1], [1], [2], [0, 0, 0, 1, 1, 2], [0], [0]>} : vector<2x8x8xf32>, vector<2x8x8xf32>, vector<2x8x8xf32> -> vector<2x8x8xf32>
    "tpu.trace_stop"() : () -> ()
    %81 = tpu.reciprocal %79 : vector<2x8x1xf32> -> vector<2x8x1xf32>
    %82 = vector.broadcast %81 : vector<2x8x1xf32> to vector<2x8x8xf32>
    %83 = arith.mulf %80, %82 : vector<2x8x8xf32>
    %c0_42 = arith.constant 0 : index
    %c0_43 = arith.constant 0 : index
    %c24 = arith.constant 24 : index
    %84 = vector.load %arg13[%c0_42, %c0_43, %c24] : memref<2x8x32xf32, #tpu.memory_space<vmem>>, vector<2x8x8xf32>
    tpu.vector_store %arg13[%c0_42, %c0_43, %c24], %83 {strides = array<i32>} : memref<2x8x32xf32, #tpu.memory_space<vmem>>, vector<2x8x8xf32>,
    %c0_44 = arith.constant 0 : index
    %c0_45 = arith.constant 0 : index
    %c0_46 = arith.constant 0 : index
    %85 = vector.load %arg13[%c0_44, %c0_45, %c0_46] : memref<2x8x32xf32, #tpu.memory_space<vmem>>, vector<2x8x32xf32>
    %86 = vector.shape_cast %85 : vector<2x8x32xf32> to vector<16x32xf32>
    %c0_47 = arith.constant 0 : index
    %c0_48 = arith.constant 0 : index
    %87 = vector.load %arg10[%c0_47, %c0_48] : memref<32x32xf32, #tpu.memory_space<vmem>>, vector<32x32xf32>
    %cst_49 = arith.constant dense<0.000000e+00> : vector<16x32xf32>
    %88 = tpu.matmul %86, %87, %cst_49 {dimension_numbers = #tpu.dot_dimension_numbers<[1], [0], [0], [1], [0, 0, 1, 1], [], []>} : vector<16x32xf32>, vector<32x32xf32>, vector<16x32xf32> -> vector<16x32xf32>
    %c0_50 = arith.constant 0 : index
    %c0_51 = arith.constant 0 : index
    %89 = vector.load %arg11[%c0_50, %c0_51] : memref<1x32xf32, #tpu.memory_space<vmem>>, vector<1x32xf32>
    %90 = vector.broadcast %89 : vector<1x32xf32> to vector<16x32xf32>
    %91 = arith.addf %88, %90 : vector<16x32xf32>
    %c0_52 = arith.constant 0 : index
    %c0_53 = arith.constant 0 : index
    %92 = vector.load %arg12[%c0_52, %c0_53] : memref<16x32xf32, #tpu.memory_space<vmem>>, vector<16x32xf32>
    tpu.vector_store %arg12[%c0_52, %c0_53], %91 {strides = array<i32>} : memref<16x32xf32, #tpu.memory_space<vmem>>, vector<16x32xf32>,
    return
  }
  func.func @transform_0(%arg0: i32) -> (i32, i32) {
    %c0_i32 = arith.constant 0 : i32
    %c0_i32_0 = arith.constant 0 : i32
    return %arg0, %c0_i32 : i32, i32
  }
  func.func @transform_1(%arg0: i32) -> (i32, i32) {
    %c0_i32 = arith.constant 0 : i32
    %c0_i32_0 = arith.constant 0 : i32
    return %arg0, %c0_i32 : i32, i32
  }
  func.func @transform_2(%arg0: i32) -> (i32, i32) {
    %c0_i32 = arith.constant 0 : i32
    %c0_i32_0 = arith.constant 0 : i32
    return %arg0, %c0_i32 : i32, i32
  }
  func.func @transform_3(%arg0: i32) -> (i32, i32) {
    %c0_i32 = arith.constant 0 : i32
    %c0_i32_0 = arith.constant 0 : i32
    %c0_i32_1 = arith.constant 0 : i32
    return %c0_i32, %c0_i32_0 : i32, i32
  }
  func.func @transform_4(%arg0: i32) -> (i32, i32) {
    %c0_i32 = arith.constant 0 : i32
    %c0_i32_0 = arith.constant 0 : i32
    %c0_i32_1 = arith.constant 0 : i32
    return %c0_i32, %c0_i32_0 : i32, i32
  }
  func.func @transform_5(%arg0: i32) -> (i32, i32) {
    %c0_i32 = arith.constant 0 : i32
    %c0_i32_0 = arith.constant 0 : i32
    %c0_i32_1 = arith.constant 0 : i32
    return %c0_i32, %c0_i32_0 : i32, i32
  }
  func.func @transform_6(%arg0: i32) -> (i32, i32) {
    %c0_i32 = arith.constant 0 : i32
    %c0_i32_0 = arith.constant 0 : i32
    %c0_i32_1 = arith.constant 0 : i32
    return %c0_i32, %c0_i32_0 : i32, i32
  }
  func.func @transform_7(%arg0: i32) -> (i32, i32) {
    %c0_i32 = arith.constant 0 : i32
    %c0_i32_0 = arith.constant 0 : i32
    %c0_i32_1 = arith.constant 0 : i32
    return %c0_i32, %c0_i32_0 : i32, i32
  }
  func.func @transform_8(%arg0: i32) -> (i32, i32) {
    %c0_i32 = arith.constant 0 : i32
    %c0_i32_0 = arith.constant 0 : i32
    %c0_i32_1 = arith.constant 0 : i32
    return %c0_i32, %c0_i32_0 : i32, i32
  }
  func.func @transform_9(%arg0: i32) -> (i32, i32) {
    %c0_i32 = arith.constant 0 : i32
    %c0_i32_0 = arith.constant 0 : i32
    %c0_i32_1 = arith.constant 0 : i32
    return %c0_i32, %c0_i32_0 : i32, i32
  }
  func.func @transform_10(%arg0: i32) -> (i32, i32) {
    %c0_i32 = arith.constant 0 : i32
    %c0_i32_0 = arith.constant 0 : i32
    %c0_i32_1 = arith.constant 0 : i32
    return %c0_i32, %c0_i32_0 : i32, i32
  }
  func.func @transform_11(%arg0: i32) -> (i32, i32) {
    %c0_i32 = arith.constant 0 : i32
    %c0_i32_0 = arith.constant 0 : i32
    return %arg0, %c0_i32 : i32, i32
  }
}

</mosaic_0001>

<llo_original>
// kernel: tpu_custom_call.1
$region0: #{tpu_custom_call.1}
  #allocation0 [shape = 'u32[]', space=smem, size = 0x4, offset = 0x4, fixed_abs, tag = 'smem constant byte address 0x4 - core index']
  #allocation1 [shape = 'u32[72,128]{1,0:T(1,128)}', space=vmem, size = 0x9000, scoped, tag = 'internal scratch']
  #allocation2 [shape = 'f32[2,8,32]{2,1,0:T(8,128)}', space=vmem, size = 0x2000, scoped, tag = 'scratch operand']
  %s0 = inlined_call_operand.hbm [shape: f32[16,32], index: 0, kind: input, shape index: {}]
  %s1 = inlined_call_operand.hbm [shape: f32[16,32], index: 1, kind: input, shape index: {}]
  %s2 = inlined_call_operand.hbm [shape: f32[16,32], index: 2, kind: input, shape index: {}]
  %s3 = inlined_call_operand.hbm [shape: f32[32,32], index: 3, kind: input, shape index: {}]
  %s4 = inlined_call_operand.vmem [shape: f32[1,32], index: 4, kind: input, shape index: {}]
  %s5 = inlined_call_operand.hbm [shape: f32[32,32], index: 5, kind: input, shape index: {}]
  %s6 = inlined_call_operand.vmem [shape: f32[1,32], index: 6, kind: input, shape index: {}]
  %s7 = inlined_call_operand.hbm [shape: f32[32,32], index: 7, kind: input, shape index: {}]
  %s8 = inlined_call_operand.vmem [shape: f32[1,32], index: 8, kind: input, shape index: {}]
  %s9 = inlined_call_operand.hbm [shape: f32[32,32], index: 9, kind: input, shape index: {}]
  %s10 = inlined_call_operand.vmem [shape: f32[1,32], index: 10, kind: input, shape index: {}]
  %s11 = inlined_call_operand.hbm [shape: f32[16,32], index: 11, kind: output, shape index: {}]
  %s12 = sld [smem:[#allocation0]]
  $region82: #{tpu_custom_call.1} parent=0
    _
  %s14 = ssub.s32 1, %s12
  %s15 = scalar_select 0, %s14, %s12
  $region1: #{tpu_custom_call.1} parent=0
    #allocation3 [shape = 'u8[8192]{0}', space=vmem, size = 0x2000, scoped, tag = 'input window, operand 0, single buffered']
    #allocation4 [shape = 's32[1]{0}', space=sflag, size = 0x4, scoped, tag = 'scoped memory for tpu_custom_call.1']
    #allocation5 [shape = 's32[1]{0}', space=sflag, size = 0x4, scoped, tag = 'scoped memory for tpu_custom_call.1']
    #allocation6 [shape = 'u8[8192]{0}', space=vmem, size = 0x2000, scoped, tag = 'input window, operand 1, single buffered']
    #allocation7 [shape = 's32[1]{0}', space=sflag, size = 0x4, scoped, tag = 'scoped memory for tpu_custom_call.1']
    #allocation8 [shape = 'u8[8192]{0}', space=vmem, size = 0x2000, scoped, tag = 'input window, operand 2, single buffered']
    #allocation9 [shape = 'u8[16384]{0}', space=vmem, size = 0x4000, scoped, tag = 'input window, operand 3, single buffered']
    #allocation10 [shape = 's32[1]{0}', space=sflag, size = 0x4, scoped, tag = 'scoped memory for tpu_custom_call.1']
    #allocation11 [shape = 'u8[16384]{0}', space=vmem, size = 0x4000, scoped, tag = 'input window, operand 5, single buffered']
    #allocation12 [shape = 'u8[16384]{0}', space=vmem, size = 0x4000, scoped, tag = 'input window, operand 7, single buffered']
    #allocation13 [shape = 's32[1]{0}', space=sflag, size = 0x4, scoped, tag = 'scoped memory for tpu_custom_call.1']
    #allocation14 [shape = 'u8[16384]{0}', space=vmem, size = 0x4000, scoped, tag = 'input window, operand 9, single buffered']
    #allocation15 [shape = 'u8[8192]{0}', space=vmem, size = 0x2000, scoped, tag = 'output window, operand 0, single buffered']
    %16 = vsyncpa [#allocation4], 0
    %17 = vsyncpa [#allocation7], 0
    %18 = vsyncpa [#allocation10], 0
    %19 = vsyncpa [#allocation13], 0
    %20 = vsyncpa [#allocation5], 0
    // Predicated region
    $region2: #{tpu_custom_call.1} parent=1 // pred_check
      _
    $region3: #{tpu_custom_call.1} parent=1 // pred_check_branch
      %22 = sbr.rel (0) target = $region5
    $region4: #{tpu_custom_call.1} parent=1 // pred_region
      %24 = vsyncadd [#allocation4], 0
      %s25 = sshll.u32 %s0, 4
      %s26 = int_to_ptr.hbm [resolvable:$true] %s25
      %s27 = sshll.u32 [#allocation3], 4
      %s28 = int_to_ptr.vmem [resolvable:$true] %s27
      %33 = dma.hbm_to_vmem [thread:$0]  %s26, 256, %s28, [#allocation4], 128, 128, 8
    $region5: #{tpu_custom_call.1} parent=1 // pred_fallthru
      _
    // Predicated region
    $region6: #{tpu_custom_call.1} parent=1 // pred_check
      _
    $region7: #{tpu_custom_call.1} parent=1 // pred_check_branch
      %35 = sbr.rel (0) target = $region9
    $region8: #{tpu_custom_call.1} parent=1 // pred_region
      %37 = vsyncadd [#allocation7], 0
      %s38 = sshll.u32 %s1, 4
      %s39 = int_to_ptr.hbm [resolvable:$true] %s38
      %s40 = sshll.u32 [#allocation6], 4
      %s41 = int_to_ptr.vmem [resolvable:$true] %s40
      %46 = dma.hbm_to_vmem [thread:$0]  %s39, 256, %s41, [#allocation7], 128, 128, 8
    $region9: #{tpu_custom_call.1} parent=1 // pred_fallthru
      _
    // Predicated region
    $region10: #{tpu_custom_call.1} parent=1 // pred_check
      _
    $region11: #{tpu_custom_call.1} parent=1 // pred_check_branch
      %48 = sbr.rel (0) target = $region13
    $region12: #{tpu_custom_call.1} parent=1 // pred_region
      %50 = vsyncadd [#allocation7], 0
      %s51 = sshll.u32 %s2, 4
      %s52 = int_to_ptr.hbm [resolvable:$true] %s51
      %s53 = sshll.u32 [#allocation8], 4
      %s54 = int_to_ptr.vmem [resolvable:$true] %s53
      %59 = dma.hbm_to_vmem [thread:$0]  %s52, 256, %s54, [#allocation7], 128, 128, 8
    $region13: #{tpu_custom_call.1} parent=1 // pred_fallthru
      _
    // Predicated region
    $region14: #{tpu_custom_call.1} parent=1 // pred_check
      _
    $region15: #{tpu_custom_call.1} parent=1 // pred_check_branch
      %61 = sbr.rel (0) target = $region17
    $region16: #{tpu_custom_call.1} parent=1 // pred_region
      %63 = vsyncadd [#allocation10], 0
      %s64 = sshll.u32 %s3, 4
      %s65 = int_to_ptr.hbm [resolvable:$true] %s64
      %s66 = sshll.u32 [#allocation9], 4
      %s67 = int_to_ptr.vmem [resolvable:$true] %s66
      %72 = dma.hbm_to_vmem [thread:$0]  %s65, 512, %s67, [#allocation10], 128, 128, 8
    $region17: #{tpu_custom_call.1} parent=1 // pred_fallthru
      _
    // Predicated region
    $region18: #{tpu_custom_call.1} parent=1 // pred_check
      _
    $region19: #{tpu_custom_call.1} parent=1 // pred_check_branch
      %74 = sbr.rel (0) target = $region21
    $region20: #{tpu_custom_call.1} parent=1 // pred_region
      _
    $region21: #{tpu_custom_call.1} parent=1 // pred_fallthru
      _
    // Predicated region
    $region22: #{tpu_custom_call.1} parent=1 // pred_check
      _
    $region23: #{tpu_custom_call.1} parent=1 // pred_check_branch
      %76 = sbr.rel (0) target = $region25
    $region24: #{tpu_custom_call.1} parent=1 // pred_region
      %78 = vsyncadd [#allocation10], 0
      %s79 = sshll.u32 %s5, 4
      %s80 = int_to_ptr.hbm [resolvable:$true] %s79
      %s81 = sshll.u32 [#allocation11], 4
      %s82 = int_to_ptr.vmem [resolvable:$true] %s81
      %87 = dma.hbm_to_vmem [thread:$0]  %s80, 512, %s82, [#allocation10], 128, 128, 8
    $region25: #{tpu_custom_call.1} parent=1 // pred_fallthru
      _
    // Predicated region
    $region26: #{tpu_custom_call.1} parent=1 // pred_check
      _
    $region27: #{tpu_custom_call.1} parent=1 // pred_check_branch
      %89 = sbr.rel (0) target = $region29
    $region28: #{tpu_custom_call.1} parent=1 // pred_region
      _
    $region29: #{tpu_custom_call.1} parent=1 // pred_fallthru
      _
    // Predicated region
    $region30: #{tpu_custom_call.1} parent=1 // pred_check
      _
    $region31: #{tpu_custom_call.1} parent=1 // pred_check_branch
      %91 = sbr.rel (0) target = $region33
    $region32: #{tpu_custom_call.1} parent=1 // pred_region
      %93 = vsyncadd [#allocation13], 0
      %s94 = sshll.u32 %s7, 4
      %s95 = int_to_ptr.hbm [resolvable:$true] %s94
      %s96 = sshll.u32 [#allocation12], 4
      %s97 = int_to_ptr.vmem [resolvable:$true] %s96
      %102 = dma.hbm_to_vmem [thread:$0]  %s95, 512, %s97, [#allocation13], 128, 128, 8
    $region33: #{tpu_custom_call.1} parent=1 // pred_fallthru
      _
    // Predicated region
    $region34: #{tpu_custom_call.1} parent=1 // pred_check
      _
    $region35: #{tpu_custom_call.1} parent=1 // pred_check_branch
      %104 = sbr.rel (0) target = $region37
    $region36: #{tpu_custom_call.1} parent=1 // pred_region
      _
    $region37: #{tpu_custom_call.1} parent=1 // pred_fallthru
      _
    // Predicated region
    $region38: #{tpu_custom_call.1} parent=1 // pred_check
      _
    $region39: #{tpu_custom_call.1} parent=1 // pred_check_branch
      %106 = sbr.rel (0) target = $region41
    $region40: #{tpu_custom_call.1} parent=1 // pred_region
      %108 = vsyncadd [#allocation13], 0
      %s109 = sshll.u32 %s9, 4
      %s110 = int_to_ptr.hbm [resolvable:$true] %s109
      %s111 = sshll.u32 [#allocation14], 4
      %s112 = int_to_ptr.vmem [resolvable:$true] %s111
      %117 = dma.hbm_to_vmem [thread:$0]  %s110, 512, %s112, [#allocation13], 128, 128, 8
    $region41: #{tpu_custom_call.1} parent=1 // pred_fallthru
      _
    // Predicated region
    $region42: #{tpu_custom_call.1} parent=1 // pred_check
      _
    $region43: #{tpu_custom_call.1} parent=1 // pred_check_branch
      %119 = sbr.rel (0) target = $region45
    $region44: #{tpu_custom_call.1} parent=1 // pred_region
      _
    $region45: #{tpu_custom_call.1} parent=1 // pred_fallthru
      _
    // Predicated region
    $region46: #{tpu_custom_call.1} parent=1 // pred_check
      _
    $region47: #{tpu_custom_call.1} parent=1 // pred_check_branch
      %121 = sbr.rel (0) target = $region49
    $region48: #{tpu_custom_call.1} parent=1 // pred_region
      %123 = dma.done [#allocation4], 256
    $region49: #{tpu_custom_call.1} parent=1 // pred_fallthru
      _
    // Predicated region
    $region50: #{tpu_custom_call.1} parent=1 // pred_check
      _
    $region51: #{tpu_custom_call.1} parent=1 // pred_check_branch
      %125 = sbr.rel (0) target = $region53
    $region52: #{tpu_custom_call.1} parent=1 // pred_region
      %127 = dma.done [#allocation7], 256
    $region53: #{tpu_custom_call.1} parent=1 // pred_fallthru
      _
    // Predicated region
    $region54: #{tpu_custom_call.1} parent=1 // pred_check
      _
    $region55: #{tpu_custom_call.1} parent=1 // pred_check_branch
      %129 = sbr.rel (0) target = $region57
    $region56: #{tpu_custom_call.1} parent=1 // pred_region
      %131 = dma.done [#allocation7], 256
    $region57: #{tpu_custom_call.1} parent=1 // pred_fallthru
      _
    // Predicated region
    $region58: #{tpu_custom_call.1} parent=1 // pred_check
      _
    $region59: #{tpu_custom_call.1} parent=1 // pred_check_branch
      %133 = sbr.rel (0) target = $region61
    $region60: #{tpu_custom_call.1} parent=1 // pred_region
      %135 = dma.done [#allocation10], 512
    $region61: #{tpu_custom_call.1} parent=1 // pred_fallthru
      _
    // Predicated region
    $region62: #{tpu_custom_call.1} parent=1 // pred_check
      _
    $region63: #{tpu_custom_call.1} parent=1 // pred_check_branch
      %137 = sbr.rel (0) target = $region65
    $region64: #{tpu_custom_call.1} parent=1 // pred_region
      %139 = dma.done [#allocation10], 512
    $region65: #{tpu_custom_call.1} parent=1 // pred_fallthru
      _
    // Predicated region
    $region66: #{tpu_custom_call.1} parent=1 // pred_check
      _
    $region67: #{tpu_custom_call.1} parent=1 // pred_check_branch
      %141 = sbr.rel (0) target = $region69
    $region68: #{tpu_custom_call.1} parent=1 // pred_region
      %143 = dma.done [#allocation13], 512
    $region69: #{tpu_custom_call.1} parent=1 // pred_fallthru
      _
    // Predicated region
    $region70: #{tpu_custom_call.1} parent=1 // pred_check
      _
    $region71: #{tpu_custom_call.1} parent=1 // pred_check_branch
      %145 = sbr.rel (0) target = $region73
    $region72: #{tpu_custom_call.1} parent=1 // pred_region
      %147 = dma.done [#allocation13], 512
    $region73: #{tpu_custom_call.1} parent=1 // pred_fallthru
      _
    %v148 = vld [vmem:[#allocation3] sm:$0xff]
    %v149 = vld [vmem:[#allocation3 + $0x8] sm:$0xff]
    %v150 = vld [vmem:[#allocation9] sm:$0xff]
    %v151 = vld [vmem:[#allocation9 + $0x8] sm:$0xff]
    %v152 = vld [vmem:[#allocation9 + $0x10] sm:$0xff]
    %v153 = vld [vmem:[#allocation9 + $0x18] sm:$0xff]
    %v154 = vld [vmem:[%s4] sm:$0x1]
    %v156 = vperm.slane %v154, 0
    %vm158 = vcmask 261120
    %v160 = vsel %vm158, %v148, 0
    %v163 = vsel %vm158, %v149, 0
    %165 = vmatpush.msra.mxu0 0.0
    %166 = vmatpush.msra.mxu0 0.0
    %167 = vmatpush.msra.mxu0 0.0
    %168 = vmatpush.msra.mxu0 0.0
    %169 = vmatpush.msra.mxu0 0.0
    %170 = vmatpush.msra.mxu0 0.0
    %171 = vmatpush.msra.mxu0 0.0
    %172 = vmatpush.msra.mxu0 0.0
    %173 = vmatpush.msra.mxu0 0.0
    %174 = vmatpush.msra.mxu0 0.0
    %175 = vmatpush.msra.mxu0 0.0
    %176 = vmatpush.msra.mxu0 0.0
    %177 = vmatpush.msra.mxu0 %v153
    %178 = vmatpush.msra.mxu0 %v152
    %179 = vmatpush.msra.mxu0 %v151
    %180 = vmatpush.msra.mxu0 %v150
    %181 = vmatmul.f32.gmra.mxu0 %v160
    %v182 = vpop.f32.mrf.mxu0
    %v183 = vadd.f32 %v156, %v182
    %184 = vmatmul.f32.gmra.mxu0 %v163
    %v185 = vpop.f32.mrf.mxu0
    %v186 = vadd.f32 %v156, %v185
    %187 = vdwg.mxu0
    %v188 = vld [vmem:[#allocation6] sm:$0xff]
    %v189 = vld [vmem:[#allocation6 + $0x8] sm:$0xff]
    %v190 = vld [vmem:[#allocation11] sm:$0xff]
    %v191 = vld [vmem:[#allocation11 + $0x8] sm:$0xff]
    %v192 = vld [vmem:[#allocation11 + $0x10] sm:$0xff]
    %v193 = vld [vmem:[#allocation11 + $0x18] sm:$0xff]
    %v194 = vld [vmem:[%s6] sm:$0x1]
    %v196 = vperm.slane %v194, 0
    %v199 = vsel %vm158, %v188, 0
    %v202 = vsel %vm158, %v189, 0
    %204 = vmatpush.msra.mxu0 0.0
    %205 = vmatpush.msra.mxu0 0.0
    %206 = vmatpush.msra.mxu0 0.0
    %207 = vmatpush.msra.mxu0 0.0
    %208 = vmatpush.msra.mxu0 0.0
    %209 = vmatpush.msra.mxu0 0.0
    %210 = vmatpush.msra.mxu0 0.0
    %211 = vmatpush.msra.mxu0 0.0
    %212 = vmatpush.msra.mxu0 0.0
    %213 = vmatpush.msra.mxu0 0.0
    %214 = vmatpush.msra.mxu0 0.0
    %215 = vmatpush.msra.mxu0 0.0
    %216 = vmatpush.msra.mxu0 %v193
    %217 = vmatpush.msra.mxu0 %v192
    %218 = vmatpush.msra.mxu0 %v191
    %219 = vmatpush.msra.mxu0 %v190
    %220 = vmatmul.f32.gmra.mxu0 %v199
    %v221 = vpop.f32.mrf.mxu0
    %v222 = vadd.f32 %v196, %v221
    %223 = vmatmul.f32.gmra.mxu0 %v202
    %v224 = vpop.f32.mrf.mxu0
    %v225 = vadd.f32 %v196, %v224
    %226 = vdwg.mxu0
    %v227 = vld [vmem:[#allocation8] sm:$0xff]
    %v228 = vld [vmem:[#allocation8 + $0x8] sm:$0xff]
    %v229 = vld [vmem:[#allocation12] sm:$0xff]
    %v230 = vld [vmem:[#allocation12 + $0x8] sm:$0xff]
    %v231 = vld [vmem:[#allocation12 + $0x10] sm:$0xff]
    %v232 = vld [vmem:[#allocation12 + $0x18] sm:$0xff]
    %v233 = vld [vmem:[%s8] sm:$0x1]
    %v235 = vperm.slane %v233, 0
    %v238 = vsel %vm158, %v227, 0
    %v241 = vsel %vm158, %v228, 0
    %243 = vmatpush.msra.mxu0 0.0
    %244 = vmatpush.msra.mxu0 0.0
    %245 = vmatpush.msra.mxu0 0.0
    %246 = vmatpush.msra.mxu0 0.0
    %247 = vmatpush.msra.mxu0 0.0
    %248 = vmatpush.msra.mxu0 0.0
    %249 = vmatpush.msra.mxu0 0.0
    %250 = vmatpush.msra.mxu0 0.0
    %251 = vmatpush.msra.mxu0 0.0
    %252 = vmatpush.msra.mxu0 0.0
    %253 = vmatpush.msra.mxu0 0.0
    %254 = vmatpush.msra.mxu0 0.0
    %255 = vmatpush.msra.mxu0 %v232
    %256 = vmatpush.msra.mxu0 %v231
    %257 = vmatpush.msra.mxu0 %v230
    %258 = vmatpush.msra.mxu0 %v229
    %259 = vmatmul.f32.gmra.mxu0 %v238
    %v260 = vpop.f32.mrf.mxu0
    %v261 = vadd.f32 %v235, %v260
    %262 = vmatmul.f32.gmra.mxu0 %v241
    %v263 = vpop.f32.mrf.mxu0
    %v264 = vadd.f32 %v235, %v263
    %265 = vdwg.mxu0
    %vm266 = vcmask 64512
    %v268 = vsel %vm266, %v183, 0
    %v271 = vsel %vm266, %v222, 0
    %273 = vmatpush.xpose.msra.mxu0 0.0
    %274 = vmatpush.xpose.msra.mxu0 0.0
    %275 = vmatpush.xpose.msra.mxu0 0.0
    %276 = vmatpush.xpose.msra.mxu0 0.0
    %277 = vmatpush.xpose.msra.mxu0 0.0
    %278 = vmatpush.xpose.msra.mxu0 0.0
    %279 = vmatpush.xpose.msra.mxu0 0.0
    %280 = vmatpush.xpose.msra.mxu0 0.0
    %281 = vmatpush.xpose.msra.mxu0 0.0
    %282 = vmatpush.xpose.msra.mxu0 0.0
    %283 = vmatpush.xpose.msra.mxu0 0.0
    %284 = vmatpush.xpose.msra.mxu0 0.0
    %285 = vmatpush.xpose.msra.mxu0 0.0
    %286 = vmatpush.xpose.msra.mxu0 0.0
    %287 = vmatpush.xpose.msra.mxu0 0.0
    %288 = vmatpush.xpose.msra.mxu0 %v271
    %289 = vmatmul.f32.gmra.mxu0 %v268
    %v290 = vpop.f32.mrf.mxu0
    %v291 = vadd.f32 0.0, %v290
    %292 = vdwg.mxu0
    %v294 = vsel %vm266, %v186, 0
    %v297 = vsel %vm266, %v225, 0
    %299 = vmatpush.xpose.msra.mxu0 0.0
    %300 = vmatpush.xpose.msra.mxu0 0.0
    %301 = vmatpush.xpose.msra.mxu0 0.0
    %302 = vmatpush.xpose.msra.mxu0 0.0
    %303 = vmatpush.xpose.msra.mxu0 0.0
    %304 = vmatpush.xpose.msra.mxu0 0.0
    %305 = vmatpush.xpose.msra.mxu0 0.0
    %306 = vmatpush.xpose.msra.mxu0 0.0
    %307 = vmatpush.xpose.msra.mxu0 0.0
    %308 = vmatpush.xpose.msra.mxu0 0.0
    %309 = vmatpush.xpose.msra.mxu0 0.0
    %310 = vmatpush.xpose.msra.mxu0 0.0
    %311 = vmatpush.xpose.msra.mxu0 0.0
    %312 = vmatpush.xpose.msra.mxu0 0.0
    %313 = vmatpush.xpose.msra.mxu0 0.0
    %314 = vmatpush.xpose.msra.mxu0 %v297
    %315 = vmatmul.f32.gmra.mxu0 %v294
    %v316 = vpop.f32.mrf.mxu0
    %v317 = vadd.f32 0.0, %v316
    %318 = vdwg.mxu0
    %v319 = vsel %vm266, %v291, -inf
    %320 = vmax.xlane.f32.xlu0 %v319
    %v321 = vpop.xlane.xlu0 %320
    %v322 = vsel %vm266, %v317, -inf
    %323 = vmax.xlane.f32.xlu0 %v322
    %v324 = vpop.xlane.xlu0 %323
    %v325 = vsub.f32 %v291, %v321
    %v326 = vsub.f32 %v317, %v324
    %v327 = vmul.f32 %v325, 1.442695
    %v328 = vpow.pop %v327
    %v329 = vmul.f32 %v326, 1.442695
    %v330 = vpow.pop %v329
    %v331 = vsel %vm266, %v328, 0.0
    %332 = vadd.xlane.f32.xlu0 %v331
    %v333 = vpop.xlane.xlu0 %332
    %v334 = vsel %vm266, %v330, 0.0
    %335 = vadd.xlane.f32.xlu0 %v334
    %v336 = vpop.xlane.xlu0 %335
    %v338 = vsel %vm266, %v328, 0
    %340 = vmatpush.msra.mxu0 0.0
    %341 = vmatpush.msra.mxu0 0.0
    %342 = vmatpush.msra.mxu0 0.0
    %343 = vmatpush.msra.mxu0 0.0
    %344 = vmatpush.msra.mxu0 0.0
    %345 = vmatpush.msra.mxu0 0.0
    %346 = vmatpush.msra.mxu0 0.0
    %347 = vmatpush.msra.mxu0 0.0
    %348 = vmatpush.msra.mxu0 0.0
    %349 = vmatpush.msra.mxu0 0.0
    %350 = vmatpush.msra.mxu0 0.0
    %351 = vmatpush.msra.mxu0 0.0
    %352 = vmatpush.msra.mxu0 0.0
    %353 = vmatpush.msra.mxu0 0.0
    %354 = vmatpush.msra.mxu0 0.0
    %355 = vmatpush.msra.mxu0 %v261
    %356 = vmatmul.f32.gmra.mxu0 %v338
    %v357 = vpop.f32.mrf.mxu0
    %v358 = vadd.f32 0.0, %v357
    %359 = vdwg.mxu0
    %v361 = vsel %vm266, %v330, 0
    %363 = vmatpush.msra.mxu0 0.0
    %364 = vmatpush.msra.mxu0 0.0
    %365 = vmatpush.msra.mxu0 0.0
    %366 = vmatpush.msra.mxu0 0.0
    %367 = vmatpush.msra.mxu0 0.0
    %368 = vmatpush.msra.mxu0 0.0
    %369 = vmatpush.msra.mxu0 0.0
    %370 = vmatpush.msra.mxu0 0.0
    %371 = vmatpush.msra.mxu0 0.0
    %372 = vmatpush.msra.mxu0 0.0
    %373 = vmatpush.msra.mxu0 0.0
    %374 = vmatpush.msra.mxu0 0.0
    %375 = vmatpush.msra.mxu0 0.0
    %376 = vmatpush.msra.mxu0 0.0
    %377 = vmatpush.msra.mxu0 0.0
    %378 = vmatpush.msra.mxu0 %v264
    %379 = vmatmul.f32.gmra.mxu0 %v361
    %v380 = vpop.f32.mrf.mxu0
    %v381 = vadd.f32 0.0, %v380
    %382 = vdwg.mxu0
    %v383 = vrcp.pop %v333
    %v384 = vmul.f32 %v333, %v383
    %v385 = vsub.f32 1.0, %v384
    %v386 = vmul.f32 %v383, %v385
    %v387 = vadd.f32 %v383, %v386
    %vm388 = vweird.f32 %v333
    %vm389 = vweird.f32 %v383
    %vm390 = vmor %vm388, %vm389
    %v391 = vsel %vm390, %v383, %v387
    %v392 = vand.u32 2147483647, %v333
    %vm393 = vcmp.eq.f32.partialorder %v392, 8.507059e+37
    %v394 = vand.u32 %v333, 2147483648
    %v395 = vor.u32 1.1754944e-38, %v394
    %v396 = vsel %vm393, %v395, %v391
    %v397 = vrcp.pop %v336
    %v398 = vmul.f32 %v336, %v397
    %v399 = vsub.f32 1.0, %v398
    %v400 = vmul.f32 %v397, %v399
    %v401 = vadd.f32 %v397, %v400
    %vm402 = vweird.f32 %v336
    %vm403 = vweird.f32 %v397
    %vm404 = vmor %vm402, %vm403
    %v405 = vsel %vm404, %v397, %v401
    %v406 = vand.u32 2147483647, %v336
    %vm407 = vcmp.eq.f32.partialorder %v406, 8.507059e+37
    %v408 = vand.u32 %v336, 2147483648
    %v409 = vor.u32 1.1754944e-38, %v408
    %v410 = vsel %vm407, %v409, %v405
    %v411 = vmul.f32 %v358, %v396
    %v412 = vmul.f32 %v381, %v410
    %413 = vst.msk [vmem:[#allocation2] sm:$0xff] %vm266, %v411
    %414 = vst.msk [vmem:[#allocation2 + $0x8] sm:$0xff] %vm266, %v412
    %415 = vrot.lane.b32.xlu0 %v183, 120
    %v416 = vpop.permute.xlu0 %415
    %417 = vrot.lane.b32.xlu0 %v222, 120
    %v418 = vpop.permute.xlu0 %417
    %v419 = vsel %vm266, %v416, 0
    %v421 = vsel %vm266, %v418, 0
    %423 = vmatpush.xpose.msra.mxu0 0.0
    %424 = vmatpush.xpose.msra.mxu0 0.0
    %425 = vmatpush.xpose.msra.mxu0 0.0
    %426 = vmatpush.xpose.msra.mxu0 0.0
    %427 = vmatpush.xpose.msra.mxu0 0.0
    %428 = vmatpush.xpose.msra.mxu0 0.0
    %429 = vmatpush.xpose.msra.mxu0 0.0
    %430 = vmatpush.xpose.msra.mxu0 0.0
    %431 = vmatpush.xpose.msra.mxu0 0.0
    %432 = vmatpush.xpose.msra.mxu0 0.0
    %433 = vmatpush.xpose.msra.mxu0 0.0
    %434 = vmatpush.xpose.msra.mxu0 0.0
    %435 = vmatpush.xpose.msra.mxu0 0.0
    %436 = vmatpush.xpose.msra.mxu0 0.0
    %437 = vmatpush.xpose.msra.mxu0 0.0
    %438 = vmatpush.xpose.msra.mxu0 %v421
    %439 = vmatmul.f32.gmra.mxu0 %v419
    %v440 = vpop.f32.mrf.mxu0
    %v441 = vadd.f32 0.0, %v440
    %442 = vdwg.mxu0
    %443 = vrot.lane.b32.xlu0 %v186, 120
    %v444 = vpop.permute.xlu0 %443
    %445 = vrot.lane.b32.xlu0 %v225, 120
    %v446 = vpop.permute.xlu0 %445
    %v447 = vsel %vm266, %v444, 0
    %v449 = vsel %vm266, %v446, 0
    %451 = vmatpush.xpose.msra.mxu0 0.0
    %452 = vmatpush.xpose.msra.mxu0 0.0
    %453 = vmatpush.xpose.msra.mxu0 0.0
    %454 = vmatpush.xpose.msra.mxu0 0.0
    %455 = vmatpush.xpose.msra.mxu0 0.0
    %456 = vmatpush.xpose.msra.mxu0 0.0
    %457 = vmatpush.xpose.msra.mxu0 0.0
    %458 = vmatpush.xpose.msra.mxu0 0.0
    %459 = vmatpush.xpose.msra.mxu0 0.0
    %460 = vmatpush.xpose.msra.mxu0 0.0
    %461 = vmatpush.xpose.msra.mxu0 0.0
    %462 = vmatpush.xpose.msra.mxu0 0.0
    %463 = vmatpush.xpose.msra.mxu0 0.0
    %464 = vmatpush.xpose.msra.mxu0 0.0
    %465 = vmatpush.xpose.msra.mxu0 0.0
    %466 = vmatpush.xpose.msra.mxu0 %v449
    %467 = vmatmul.f32.gmra.mxu0 %v447
    %v468 = vpop.f32.mrf.mxu0
    %v469 = vadd.f32 0.0, %v468
    %470 = vdwg.mxu0
    %v471 = vsel %vm266, %v441, -inf
    %472 = vmax.xlane.f32.xlu0 %v471
    %v473 = vpop.xlane.xlu0 %472
    %v474 = vsel %vm266, %v469, -inf
    %475 = vmax.xlane.f32.xlu0 %v474
    %v476 = vpop.xlane.xlu0 %475
    %v477 = vsub.f32 %v441, %v473
    %v478 = vsub.f32 %v469, %v476
    %v479 = vmul.f32 %v477, 1.442695
    %v480 = vpow.pop %v479
    %v481 = vmul.f32 %v478, 1.442695
    %v482 = vpow.pop %v481
    %v483 = vsel %vm266, %v480, 0.0
    %484 = vadd.xlane.f32.xlu0 %v483
    %v485 = vpop.xlane.xlu0 %484
    %v486 = vsel %vm266, %v482, 0.0
    %487 = vadd.xlane.f32.xlu0 %v486
    %v488 = vpop.xlane.xlu0 %487
    %490 = vrot.lane.b32.xlu0 %v261, 120
    %v491 = vpop.permute.xlu0 %490
    %v494 = vsel %vm266, %v480, 0
    %496 = vmatpush.msra.mxu0 0.0
    %497 = vmatpush.msra.mxu0 0.0
    %498 = vmatpush.msra.mxu0 0.0
    %499 = vmatpush.msra.mxu0 0.0
    %500 = vmatpush.msra.mxu0 0.0
    %501 = vmatpush.msra.mxu0 0.0
    %502 = vmatpush.msra.mxu0 0.0
    %503 = vmatpush.msra.mxu0 0.0
    %504 = vmatpush.msra.mxu0 0.0
    %505 = vmatpush.msra.mxu0 0.0
    %506 = vmatpush.msra.mxu0 0.0
    %507 = vmatpush.msra.mxu0 0.0
    %508 = vmatpush.msra.mxu0 0.0
    %509 = vmatpush.msra.mxu0 0.0
    %510 = vmatpush.msra.mxu0 0.0
    %511 = vmatpush.msra.mxu0 %v491
    %512 = vmatmul.f32.gmra.mxu0 %v494
    %v513 = vpop.f32.mrf.mxu0
    %v514 = vadd.f32 0.0, %v513
    %515 = vdwg.mxu0
    %517 = vrot.lane.b32.xlu0 %v264, 120
    %v518 = vpop.permute.xlu0 %517
    %v521 = vsel %vm266, %v482, 0
    %523 = vmatpush.msra.mxu0 0.0
    %524 = vmatpush.msra.mxu0 0.0
    %525 = vmatpush.msra.mxu0 0.0
    %526 = vmatpush.msra.mxu0 0.0
    %527 = vmatpush.msra.mxu0 0.0
    %528 = vmatpush.msra.mxu0 0.0
    %529 = vmatpush.msra.mxu0 0.0
    %530 = vmatpush.msra.mxu0 0.0
    %531 = vmatpush.msra.mxu0 0.0
    %532 = vmatpush.msra.mxu0 0.0
    %533 = vmatpush.msra.mxu0 0.0
    %534 = vmatpush.msra.mxu0 0.0
    %535 = vmatpush.msra.mxu0 0.0
    %536 = vmatpush.msra.mxu0 0.0
    %537 = vmatpush.msra.mxu0 0.0
    %538 = vmatpush.msra.mxu0 %v518
    %539 = vmatmul.f32.gmra.mxu0 %v521
    %v540 = vpop.f32.mrf.mxu0
    %v541 = vadd.f32 0.0, %v540
    %542 = vdwg.mxu0
    %v543 = vrcp.pop %v485
    %v544 = vmul.f32 %v485, %v543
    %v545 = vsub.f32 1.0, %v544
    %v546 = vmul.f32 %v543, %v545
    %v547 = vadd.f32 %v543, %v546
    %vm548 = vweird.f32 %v485
    %vm549 = vweird.f32 %v543
    %vm550 = vmor %vm548, %vm549
    %v551 = vsel %vm550, %v543, %v547
    %v552 = vand.u32 2147483647, %v485
    %vm553 = vcmp.eq.f32.partialorder %v552, 8.507059e+37
    %v554 = vand.u32 %v485, 2147483648
    %v555 = vor.u32 1.1754944e-38, %v554
    %v556 = vsel %vm553, %v555, %v551
    %v557 = vrcp.pop %v488
    %v558 = vmul.f32 %v488, %v557
    %v559 = vsub.f32 1.0, %v558
    %v560 = vmul.f32 %v557, %v559
    %v561 = vadd.f32 %v557, %v560
    %vm562 = vweird.f32 %v488
    %vm563 = vweird.f32 %v557
    %vm564 = vmor %vm562, %vm563
    %v565 = vsel %vm564, %v557, %v561
    %v566 = vand.u32 2147483647, %v488
    %vm567 = vcmp.eq.f32.partialorder %v566, 8.507059e+37
    %v568 = vand.u32 %v488, 2147483648
    %v569 = vor.u32 1.1754944e-38, %v568
    %v570 = vsel %vm567, %v569, %v565
    %v571 = vmul.f32 %v514, %v556
    %v572 = vmul.f32 %v541, %v570
    %575 = vrot.lane.b32.xlu0 %v571, 8
    %v576 = vpop.permute.xlu0 %575
    %577 = vrot.lane.b32.xlu0 %v572, 8
    %v578 = vpop.permute.xlu0 %577
    %vm581 = vcmask 130112
    %582 = vst.msk [vmem:[#allocation2] sm:$0xff] %vm581, %v576
    %583 = vst.msk [vmem:[#allocation2 + $0x8] sm:$0xff] %vm581, %v578
    %584 = vrot.lane.b32.xlu0 %v183, 112
    %v585 = vpop.permute.xlu0 %584
    %586 = vrot.lane.b32.xlu0 %v222, 112
    %v587 = vpop.permute.xlu0 %586
    %v588 = vsel %vm266, %v585, 0
    %v590 = vsel %vm266, %v587, 0
    %592 = vmatpush.xpose.msra.mxu0 0.0
    %593 = vmatpush.xpose.msra.mxu0 0.0
    %594 = vmatpush.xpose.msra.mxu0 0.0
    %595 = vmatpush.xpose.msra.mxu0 0.0
    %596 = vmatpush.xpose.msra.mxu0 0.0
    %597 = vmatpush.xpose.msra.mxu0 0.0
    %598 = vmatpush.xpose.msra.mxu0 0.0
    %599 = vmatpush.xpose.msra.mxu0 0.0
    %600 = vmatpush.xpose.msra.mxu0 0.0
    %601 = vmatpush.xpose.msra.mxu0 0.0
    %602 = vmatpush.xpose.msra.mxu0 0.0
    %603 = vmatpush.xpose.msra.mxu0 0.0
    %604 = vmatpush.xpose.msra.mxu0 0.0
    %605 = vmatpush.xpose.msra.mxu0 0.0
    %606 = vmatpush.xpose.msra.mxu0 0.0
    %607 = vmatpush.xpose.msra.mxu0 %v590
    %608 = vmatmul.f32.gmra.mxu0 %v588
    %v609 = vpop.f32.mrf.mxu0
    %v610 = vadd.f32 0.0, %v609
    %611 = vdwg.mxu0
    %612 = vrot.lane.b32.xlu0 %v186, 112
    %v613 = vpop.permute.xlu0 %612
    %614 = vrot.lane.b32.xlu0 %v225, 112
    %v615 = vpop.permute.xlu0 %614
    %v616 = vsel %vm266, %v613, 0
    %v618 = vsel %vm266, %v615, 0
    %620 = vmatpush.xpose.msra.mxu0 0.0
    %621 = vmatpush.xpose.msra.mxu0 0.0
    %622 = vmatpush.xpose.msra.mxu0 0.0
    %623 = vmatpush.xpose.msra.mxu0 0.0
    %624 = vmatpush.xpose.msra.mxu0 0.0
    %625 = vmatpush.xpose.msra.mxu0 0.0
    %626 = vmatpush.xpose.msra.mxu0 0.0
    %627 = vmatpush.xpose.msra.mxu0 0.0
    %628 = vmatpush.xpose.msra.mxu0 0.0
    %629 = vmatpush.xpose.msra.mxu0 0.0
    %630 = vmatpush.xpose.msra.mxu0 0.0
    %631 = vmatpush.xpose.msra.mxu0 0.0
    %632 = vmatpush.xpose.msra.mxu0 0.0
    %633 = vmatpush.xpose.msra.mxu0 0.0
    %634 = vmatpush.xpose.msra.mxu0 0.0
    %635 = vmatpush.xpose.msra.mxu0 %v618
    %636 = vmatmul.f32.gmra.mxu0 %v616
    %v637 = vpop.f32.mrf.mxu0
    %v638 = vadd.f32 0.0, %v637
    %639 = vdwg.mxu0
    %v640 = vsel %vm266, %v610, -inf
    %641 = vmax.xlane.f32.xlu0 %v640
    %v642 = vpop.xlane.xlu0 %641
    %v643 = vsel %vm266, %v638, -inf
    %644 = vmax.xlane.f32.xlu0 %v643
    %v645 = vpop.xlane.xlu0 %644
    %v646 = vsub.f32 %v610, %v642
    %v647 = vsub.f32 %v638, %v645
    %v648 = vmul.f32 %v646, 1.442695
    %v649 = vpow.pop %v648
    %v650 = vmul.f32 %v647, 1.442695
    %v651 = vpow.pop %v650
    %v652 = vsel %vm266, %v649, 0.0
    %653 = vadd.xlane.f32.xlu0 %v652
    %v654 = vpop.xlane.xlu0 %653
    %v655 = vsel %vm266, %v651, 0.0
    %656 = vadd.xlane.f32.xlu0 %v655
    %v657 = vpop.xlane.xlu0 %656
    %658 = vrot.lane.b32.xlu0 %v261, 112
    %v659 = vpop.permute.xlu0 %658
    %v662 = vsel %vm266, %v649, 0
    %664 = vmatpush.msra.mxu0 0.0
    %665 = vmatpush.msra.mxu0 0.0
    %666 = vmatpush.msra.mxu0 0.0
    %667 = vmatpush.msra.mxu0 0.0
    %668 = vmatpush.msra.mxu0 0.0
    %669 = vmatpush.msra.mxu0 0.0
    %670 = vmatpush.msra.mxu0 0.0
    %671 = vmatpush.msra.mxu0 0.0
    %672 = vmatpush.msra.mxu0 0.0
    %673 = vmatpush.msra.mxu0 0.0
    %674 = vmatpush.msra.mxu0 0.0
    %675 = vmatpush.msra.mxu0 0.0
    %676 = vmatpush.msra.mxu0 0.0
    %677 = vmatpush.msra.mxu0 0.0
    %678 = vmatpush.msra.mxu0 0.0
    %679 = vmatpush.msra.mxu0 %v659
    %680 = vmatmul.f32.gmra.mxu0 %v662
    %v681 = vpop.f32.mrf.mxu0
    %v682 = vadd.f32 0.0, %v681
    %683 = vdwg.mxu0
    %684 = vrot.lane.b32.xlu0 %v264, 112
    %v685 = vpop.permute.xlu0 %684
    %v688 = vsel %vm266, %v651, 0
    %690 = vmatpush.msra.mxu0 0.0
    %691 = vmatpush.msra.mxu0 0.0
    %692 = vmatpush.msra.mxu0 0.0
    %693 = vmatpush.msra.mxu0 0.0
    %694 = vmatpush.msra.mxu0 0.0
    %695 = vmatpush.msra.mxu0 0.0
    %696 = vmatpush.msra.mxu0 0.0
    %697 = vmatpush.msra.mxu0 0.0
    %698 = vmatpush.msra.mxu0 0.0
    %699 = vmatpush.msra.mxu0 0.0
    %700 = vmatpush.msra.mxu0 0.0
    %701 = vmatpush.msra.mxu0 0.0
    %702 = vmatpush.msra.mxu0 0.0
    %703 = vmatpush.msra.mxu0 0.0
    %704 = vmatpush.msra.mxu0 0.0
    %705 = vmatpush.msra.mxu0 %v685
    %706 = vmatmul.f32.gmra.mxu0 %v688
    %v707 = vpop.f32.mrf.mxu0
    %v708 = vadd.f32 0.0, %v707
    %709 = vdwg.mxu0
    %v710 = vrcp.pop %v654
    %v711 = vmul.f32 %v654, %v710
    %v712 = vsub.f32 1.0, %v711
    %v713 = vmul.f32 %v710, %v712
    %v714 = vadd.f32 %v710, %v713
    %vm715 = vweird.f32 %v654
    %vm716 = vweird.f32 %v710
    %vm717 = vmor %vm715, %vm716
    %v718 = vsel %vm717, %v710, %v714
    %v719 = vand.u32 2147483647, %v654
    %vm720 = vcmp.eq.f32.partialorder %v719, 8.507059e+37
    %v721 = vand.u32 %v654, 2147483648
    %v722 = vor.u32 1.1754944e-38, %v721
    %v723 = vsel %vm720, %v722, %v718
    %v724 = vrcp.pop %v657
    %v725 = vmul.f32 %v657, %v724
    %v726 = vsub.f32 1.0, %v725
    %v727 = vmul.f32 %v724, %v726
    %v728 = vadd.f32 %v724, %v727
    %vm729 = vweird.f32 %v657
    %vm730 = vweird.f32 %v724
    %vm731 = vmor %vm729, %vm730
    %v732 = vsel %vm731, %v724, %v728
    %v733 = vand.u32 2147483647, %v657
    %vm734 = vcmp.eq.f32.partialorder %v733, 8.507059e+37
    %v735 = vand.u32 %v657, 2147483648
    %v736 = vor.u32 1.1754944e-38, %v735
    %v737 = vsel %vm734, %v736, %v732
    %v738 = vmul.f32 %v682, %v723
    %v739 = vmul.f32 %v708, %v737
    %742 = vrot.lane.b32.xlu0 %v738, 16
    %v743 = vpop.permute.xlu0 %742
    %744 = vrot.lane.b32.xlu0 %v739, 16
    %v745 = vpop.permute.xlu0 %744
    %vm748 = vcmask 195712
    %749 = vst.msk [vmem:[#allocation2] sm:$0xff] %vm748, %v743
    %750 = vst.msk [vmem:[#allocation2 + $0x8] sm:$0xff] %vm748, %v745
    %751 = vrot.lane.b32.xlu0 %v183, 104
    %v752 = vpop.permute.xlu0 %751
    %753 = vrot.lane.b32.xlu0 %v222, 104
    %v754 = vpop.permute.xlu0 %753
    %v755 = vsel %vm266, %v752, 0
    %v757 = vsel %vm266, %v754, 0
    %759 = vmatpush.xpose.msra.mxu0 0.0
    %760 = vmatpush.xpose.msra.mxu0 0.0
    %761 = vmatpush.xpose.msra.mxu0 0.0
    %762 = vmatpush.xpose.msra.mxu0 0.0
    %763 = vmatpush.xpose.msra.mxu0 0.0
    %764 = vmatpush.xpose.msra.mxu0 0.0
    %765 = vmatpush.xpose.msra.mxu0 0.0
    %766 = vmatpush.xpose.msra.mxu0 0.0
    %767 = vmatpush.xpose.msra.mxu0 0.0
    %768 = vmatpush.xpose.msra.mxu0 0.0
    %769 = vmatpush.xpose.msra.mxu0 0.0
    %770 = vmatpush.xpose.msra.mxu0 0.0
    %771 = vmatpush.xpose.msra.mxu0 0.0
    %772 = vmatpush.xpose.msra.mxu0 0.0
    %773 = vmatpush.xpose.msra.mxu0 0.0
    %774 = vmatpush.xpose.msra.mxu0 %v757
    %775 = vmatmul.f32.gmra.mxu0 %v755
    %v776 = vpop.f32.mrf.mxu0
    %v777 = vadd.f32 0.0, %v776
    %778 = vdwg.mxu0
    %779 = vrot.lane.b32.xlu0 %v186, 104
    %v780 = vpop.permute.xlu0 %779
    %781 = vrot.lane.b32.xlu0 %v225, 104
    %v782 = vpop.permute.xlu0 %781
    %v783 = vsel %vm266, %v780, 0
    %v785 = vsel %vm266, %v782, 0
    %787 = vmatpush.xpose.msra.mxu0 0.0
    %788 = vmatpush.xpose.msra.mxu0 0.0
    %789 = vmatpush.xpose.msra.mxu0 0.0
    %790 = vmatpush.xpose.msra.mxu0 0.0
    %791 = vmatpush.xpose.msra.mxu0 0.0
    %792 = vmatpush.xpose.msra.mxu0 0.0
    %793 = vmatpush.xpose.msra.mxu0 0.0
    %794 = vmatpush.xpose.msra.mxu0 0.0
    %795 = vmatpush.xpose.msra.mxu0 0.0
    %796 = vmatpush.xpose.msra.mxu0 0.0
    %797 = vmatpush.xpose.msra.mxu0 0.0
    %798 = vmatpush.xpose.msra.mxu0 0.0
    %799 = vmatpush.xpose.msra.mxu0 0.0
    %800 = vmatpush.xpose.msra.mxu0 0.0
    %801 = vmatpush.xpose.msra.mxu0 0.0
    %802 = vmatpush.xpose.msra.mxu0 %v785
    %803 = vmatmul.f32.gmra.mxu0 %v783
    %v804 = vpop.f32.mrf.mxu0
    %v805 = vadd.f32 0.0, %v804
    %806 = vdwg.mxu0
    %v807 = vsel %vm266, %v777, -inf
    %808 = vmax.xlane.f32.xlu0 %v807
    %v809 = vpop.xlane.xlu0 %808
    %v810 = vsel %vm266, %v805, -inf
    %811 = vmax.xlane.f32.xlu0 %v810
    %v812 = vpop.xlane.xlu0 %811
    %v813 = vsub.f32 %v777, %v809
    %v814 = vsub.f32 %v805, %v812
    %v815 = vmul.f32 %v813, 1.442695
    %v816 = vpow.pop %v815
    %v817 = vmul.f32 %v814, 1.442695
    %v818 = vpow.pop %v817
    %v819 = vsel %vm266, %v816, 0.0
    %820 = vadd.xlane.f32.xlu0 %v819
    %v821 = vpop.xlane.xlu0 %820
    %v822 = vsel %vm266, %v818, 0.0
    %823 = vadd.xlane.f32.xlu0 %v822
    %v824 = vpop.xlane.xlu0 %823
    %825 = vrot.lane.b32.xlu0 %v261, 104
    %v826 = vpop.permute.xlu0 %825
    %v829 = vsel %vm266, %v816, 0
    %831 = vmatpush.msra.mxu0 0.0
    %832 = vmatpush.msra.mxu0 0.0
    %833 = vmatpush.msra.mxu0 0.0
    %834 = vmatpush.msra.mxu0 0.0
    %835 = vmatpush.msra.mxu0 0.0
    %836 = vmatpush.msra.mxu0 0.0
    %837 = vmatpush.msra.mxu0 0.0
    %838 = vmatpush.msra.mxu0 0.0
    %839 = vmatpush.msra.mxu0 0.0
    %840 = vmatpush.msra.mxu0 0.0
    %841 = vmatpush.msra.mxu0 0.0
    %842 = vmatpush.msra.mxu0 0.0
    %843 = vmatpush.msra.mxu0 0.0
    %844 = vmatpush.msra.mxu0 0.0
    %845 = vmatpush.msra.mxu0 0.0
    %846 = vmatpush.msra.mxu0 %v826
    %847 = vmatmul.f32.gmra.mxu0 %v829
    %v848 = vpop.f32.mrf.mxu0
    %v849 = vadd.f32 0.0, %v848
    %850 = vdwg.mxu0
    %851 = vrot.lane.b32.xlu0 %v264, 104
    %v852 = vpop.permute.xlu0 %851
    %v855 = vsel %vm266, %v818, 0
    %857 = vmatpush.msra.mxu0 0.0
    %858 = vmatpush.msra.mxu0 0.0
    %859 = vmatpush.msra.mxu0 0.0
    %860 = vmatpush.msra.mxu0 0.0
    %861 = vmatpush.msra.mxu0 0.0
    %862 = vmatpush.msra.mxu0 0.0
    %863 = vmatpush.msra.mxu0 0.0
    %864 = vmatpush.msra.mxu0 0.0
    %865 = vmatpush.msra.mxu0 0.0
    %866 = vmatpush.msra.mxu0 0.0
    %867 = vmatpush.msra.mxu0 0.0
    %868 = vmatpush.msra.mxu0 0.0
    %869 = vmatpush.msra.mxu0 0.0
    %870 = vmatpush.msra.mxu0 0.0
    %871 = vmatpush.msra.mxu0 0.0
    %872 = vmatpush.msra.mxu0 %v852
    %873 = vmatmul.f32.gmra.mxu0 %v855
    %v874 = vpop.f32.mrf.mxu0
    %v875 = vadd.f32 0.0, %v874
    %876 = vdwg.mxu0
    %v877 = vrcp.pop %v821
    %v878 = vmul.f32 %v821, %v877
    %v879 = vsub.f32 1.0, %v878
    %v880 = vmul.f32 %v877, %v879
    %v881 = vadd.f32 %v877, %v880
    %vm882 = vweird.f32 %v821
    %vm883 = vweird.f32 %v877
    %vm884 = vmor %vm882, %vm883
    %v885 = vsel %vm884, %v877, %v881
    %v886 = vand.u32 2147483647, %v821
    %vm887 = vcmp.eq.f32.partialorder %v886, 8.507059e+37
    %v888 = vand.u32 %v821, 2147483648
    %v889 = vor.u32 1.1754944e-38, %v888
    %v890 = vsel %vm887, %v889, %v885
    %v891 = vrcp.pop %v824
    %v892 = vmul.f32 %v824, %v891
    %v893 = vsub.f32 1.0, %v892
    %v894 = vmul.f32 %v891, %v893
    %v895 = vadd.f32 %v891, %v894
    %vm896 = vweird.f32 %v824
    %vm897 = vweird.f32 %v891
    %vm898 = vmor %vm896, %vm897
    %v899 = vsel %vm898, %v891, %v895
    %v900 = vand.u32 2147483647, %v824
    %vm901 = vcmp.eq.f32.partialorder %v900, 8.507059e+37
    %v902 = vand.u32 %v824, 2147483648
    %v903 = vor.u32 1.1754944e-38, %v902
    %v904 = vsel %vm901, %v903, %v899
    %v905 = vmul.f32 %v849, %v890
    %v906 = vmul.f32 %v875, %v904
    %909 = vrot.lane.b32.xlu0 %v905, 24
    %v910 = vpop.permute.xlu0 %909
    %911 = vrot.lane.b32.xlu0 %v906, 24
    %v912 = vpop.permute.xlu0 %911
    %vm915 = vcmask 261312
    %916 = vst.msk [vmem:[#allocation2] sm:$0xff] %vm915, %v910
    %917 = vst.msk [vmem:[#allocation2 + $0x8] sm:$0xff] %vm915, %v912
    %v918 = vld [vmem:[#allocation2] sm:$0xff]
    %v919 = vld [vmem:[#allocation2 + $0x8] sm:$0xff]
    %v920 = vld [vmem:[#allocation14] sm:$0xff]
    %v921 = vld [vmem:[#allocation14 + $0x8] sm:$0xff]
    %v922 = vld [vmem:[#allocation14 + $0x10] sm:$0xff]
    %v923 = vld [vmem:[#allocation14 + $0x18] sm:$0xff]
    %v924 = vld [vmem:[%s10] sm:$0x1]
    %v926 = vperm.slane %v924, 0
    %v929 = vsel %vm158, %v918, 0
    %v932 = vsel %vm158, %v919, 0
    %934 = vmatpush.msra.mxu0 0.0
    %935 = vmatpush.msra.mxu0 0.0
    %936 = vmatpush.msra.mxu0 0.0
    %937 = vmatpush.msra.mxu0 0.0
    %938 = vmatpush.msra.mxu0 0.0
    %939 = vmatpush.msra.mxu0 0.0
    %940 = vmatpush.msra.mxu0 0.0
    %941 = vmatpush.msra.mxu0 0.0
    %942 = vmatpush.msra.mxu0 0.0
    %943 = vmatpush.msra.mxu0 0.0
    %944 = vmatpush.msra.mxu0 0.0
    %945 = vmatpush.msra.mxu0 0.0
    %946 = vmatpush.msra.mxu0 %v923
    %947 = vmatpush.msra.mxu0 %v922
    %948 = vmatpush.msra.mxu0 %v921
    %949 = vmatpush.msra.mxu0 %v920
    %950 = vmatmul.f32.gmra.mxu0 %v929
    %v951 = vpop.f32.mrf.mxu0
    %v952 = vadd.f32 %v926, %v951
    %953 = vmatmul.f32.gmra.mxu0 %v932
    %v954 = vpop.f32.mrf.mxu0
    %v955 = vadd.f32 %v926, %v954
    %956 = vdwg.mxu0
    %957 = vst.msk [vmem:[#allocation15] sm:$0xff] %vm158, %v952
    %958 = vst.msk [vmem:[#allocation15 + $0x8] sm:$0xff] %vm158, %v955
    // Predicated region
    $region74: #{tpu_custom_call.1} parent=1 // pred_check
      _
    $region75: #{tpu_custom_call.1} parent=1 // pred_check_branch
      %960 = sbr.rel (0) target = $region77
    $region76: #{tpu_custom_call.1} parent=1 // pred_region
      %962 = vsyncadd [#allocation5], 0
      %s963 = sshll.u32 [#allocation15], 4
      %s964 = int_to_ptr.vmem [resolvable:$true] %s963
      %s965 = sshll.u32 %s11, 4
      %s966 = int_to_ptr.hbm [resolvable:$true] %s965
      %971 = dma.vmem_to_hbm [thread:$0]  %s964, 256, %s966, [#allocation5], 128, 128, 8
    $region77: #{tpu_custom_call.1} parent=1 // pred_fallthru
      _
    // Predicated region
    $region78: #{tpu_custom_call.1} parent=1 // pred_check
      _
    $region79: #{tpu_custom_call.1} parent=1 // pred_check_branch
      %973 = sbr.rel (0) target = $region81
    $region80: #{tpu_custom_call.1} parent=1 // pred_region
      %975 = dma.done [#allocation5], 256
    $region81: #{tpu_custom_call.1} parent=1 // pred_fallthru
      _
    %976 = vsyncpa [#allocation4], 1
    %977 = vsyncpa [#allocation7], 1
    %978 = vsyncpa [#allocation10], 1
    %979 = vsyncpa [#allocation13], 1
    %980 = vsyncpa [#allocation5], 1

</llo_original>
